<compile_context>
chip_gen: v7x
topology: tpu7x:2x2x1
jax: 0.10.0
libtpu: 0.0.40
codegen_flags: <defaults>
</compile_context>

<pallas_src>
import functools
import math

import numpy as np
import jax
import jax.numpy as jnp
from jax.experimental import pallas as pl
from jax.experimental.pallas import tpu as pltpu


def _pil_bilinear_weights(in_size: int, out_size: int) -> np.ndarray:
    """PIL-style antialiased bilinear (triangle filter) matrix, shape (out, in)."""
    support = 1.0
    scale = in_size / out_size
    filterscale = max(scale, 1.0)
    span = support * filterscale
    R = np.zeros((out_size, in_size), dtype=np.float32)
    for i in range(out_size):
        center = (i + 0.5) * scale
        xmin = max(int(math.floor(center - span)), 0)
        xmax = min(int(math.ceil(center + span)), in_size)
        xs = np.arange(xmin, xmax, dtype=np.float64)
        w = 1.0 - np.abs((xs + 0.5 - center) / filterscale)
        w = np.clip(w, 0.0, None)
        s = w.sum()
        if s > 0.0:
            w = w / s
        R[i, xmin:xmax] = w.astype(np.float32)
    return R


def _padded_weights(in_size: int, resized: int, padded: int, pad_before: int) -> np.ndarray:
    """Resample matrix with the centered zero-padding folded in. Shape (padded, in)."""
    R = np.zeros((padded, in_size), dtype=np.float32)
    R[pad_before:pad_before + resized, :] = _pil_bilinear_weights(in_size, resized)
    return R


@functools.lru_cache(maxsize=64)
def _cached_device_weights(h_in, w_in, out_h, out_w, new_h, new_w,
                           pad_top, pad_left, dtype):
    """Build (and keep device-resident) the padded resample matrices."""
    rh = _padded_weights(h_in, new_h, out_h, pad_top)      # (H_out, H_in)
    rw = _padded_weights(w_in, new_w, out_w, pad_left)     # (W_out, W_in)
    rwt = np.ascontiguousarray(rw.T)                       # (W_in, W_out)
    return jnp.asarray(rh, dtype), jnp.asarray(rwt, dtype)


def _vmem_capacity_bytes() -> int:
    """Device VMEM capacity with a conservative (v7x-safe) fallback."""
    try:
        info = pltpu.get_tpu_info()
        cap = getattr(info, "vmem_capacity_bytes", None)
        if cap:
            return int(cap)
    except Exception:
        pass
    return 64 << 20   # v7x per-TensorCore VMEM; safe lower bound everywhere


def _resize_pad_kernel(rh_ref, rwt_ref, x_ref, o_ref, *, compute_dtype):
    # rh_ref:  (tile_h, H_in)      bf16, padded H resample rows (zero rows = pad)
    # rwt_ref: (W_in,  W_out)      bf16, padded + pre-transposed W resample matrix
    # x_ref:   (nb, C, H_in, W_in) block in the ORIGINAL image dtype
    # o_ref:   (nb, C, tile_h, W_out)
    rh = rh_ref[...]
    rwt = rwt_ref[...]
    x = x_ref[...].astype(compute_dtype)          # in-kernel cast: no wrapper pass
    nb, C, H_in, W_in = x.shape

    xr = x.reshape(nb * C, H_in, W_in)
    # H-resize: nb*C small static dots (C is tiny for images). Results are
    # concatenated so the W-resize below is ONE flattened MXU matmul whose
    # result is the whole output slab -> single store.
    rows = [jnp.dot(rh, xr[i], preferred_element_type=jnp.float32)
            for i in range(nb * C)]                                 # (tile_h, W_in) f32
    th = jnp.concatenate(rows, axis=0).astype(compute_dtype)        # (nb*C*tile_h, W_in)
    out = jnp.dot(th, rwt, preferred_element_type=jnp.float32)      # (nb*C*tile_h, W_out)
    o_ref[...] = out.reshape(o_ref.shape).astype(o_ref.dtype)


def resize_and_pad(image: jax.Array, output_size, *, compute_dtype=jnp.bfloat16) -> jax.Array:
    """image: (N, C, H, W); output_size: (new_width, new_height). Returns image.dtype."""
    N, C, H_in, W_in = image.shape
    new_width, new_height = output_size
    old_width, old_height = W_in, H_in

    # Mirror the PyTorch module's size arithmetic exactly.
    scale = min(new_width / old_width, new_height / old_height)
    new_w = int(old_width * scale)
    new_h = int(old_height * scale)
    if new_w <= 0 or new_h <= 0:
        raise ValueError(
            f"Degenerate resize: resized size would be ({new_w}, {new_h}) for "
            f"input {(old_width, old_height)} -> output {output_size}.")
    pad_left = (new_width - new_w) // 2
    pad_top = (new_height - new_h) // 2

    rh, rwt = _cached_device_weights(H_in, W_in, new_height, new_width,
                                     new_h, new_w, pad_top, pad_left, compute_dtype)

    in_item = int(np.dtype(image.dtype).itemsize)
    cdt_item = int(np.dtype(compute_dtype).itemsize)

    vmem_cap = _vmem_capacity_bytes()
    vmem_ceiling = vmem_cap - (16 << 20)          # headroom for Mosaic internal scratch
    block_budget = int(vmem_ceiling * 0.85)

    def block_bytes(nb, th):
        weights = 2 * (th * H_in + W_in * new_width) * cdt_item     # double-buffered
        xin = 2 * nb * C * H_in * W_in * in_item                    # double-buffered in
        xout = 2 * nb * C * th * new_width * in_item                # double-buffered out
        temps = nb * C * (H_in * W_in * cdt_item                    # bf16 copy of x
                          + th * W_in * (4 + cdt_item)              # f32 + bf16 mid
                          + th * new_width * 4)                     # f32 result
        return weights + xin + xout + temps

    # Output-row tile: full H_out if it fits the budget, else largest multiple of 8.
    tile_h = new_height
    while tile_h > 8 and block_bytes(1, tile_h) > block_budget:
        tile_h = max(8, (tile_h // 2 + 7) // 8 * 8)

    # Batch items per grid step: grow while blocks fit, N % nb == 0 and the grid
    # keeps >= 2 steps (pipelining overlap / v7x two-TensorCore sharding).
    nb = 1
    if tile_h == new_height:
        for cand in range(2, min(N, 8) + 1):
            if (N % cand == 0
                    and (N // cand) * pl.cdiv(new_height, tile_h) >= 2
                    and block_bytes(cand, tile_h) <= block_budget):
                nb = cand

    grid = (N // nb, pl.cdiv(new_height, tile_h))
    needed = block_bytes(nb, tile_h) + (4 << 20)
    vmem_limit = int(min(max(needed, 32 << 20), vmem_ceiling))

    kernel = functools.partial(_resize_pad_kernel, compute_dtype=compute_dtype)

    out = pl.pallas_call(
        kernel,
        out_shape=jax.ShapeDtypeStruct((N, C, new_height, new_width), image.dtype),
        grid_spec=pltpu.PrefetchScalarGridSpec(
            num_scalar_prefetch=0,
            grid=grid,
            in_specs=[
                pl.BlockSpec((tile_h, H_in), lambda n, h: (h, 0)),
                pl.BlockSpec((W_in, new_width), lambda n, h: (0, 0)),
                pl.BlockSpec((nb, C, H_in, W_in), lambda n, h: (n, 0, 0, 0)),
            ],
            out_specs=pl.BlockSpec((nb, C, tile_h, new_width),
                                   lambda n, h: (n, 0, h, 0)),
        ),
        compiler_params=pltpu.CompilerParams(
            dimension_semantics=("parallel", "parallel"),
            vmem_limit_bytes=vmem_limit),
    )(rh, rwt, image)
    return out


if __name__ == "__main__":
    key = jax.random.PRNGKey(0)
    # batch=2, channels=3, H=16, W=24 (PIL size = (24, 16)), output_size=(16, 16)
    # -> scale = 2/3 -> resized (W, H) = (16, 10), pad top/bottom = 3/3, no W pad.
    image = jax.random.uniform(key, (2, 3, 16, 24), dtype=jnp.float32)
    output_size = (16, 16)  # (new_width, new_height)

    out = resize_and_pad(image, output_size)
    out = jax.block_until_ready(out)
    assert out.shape == (2, 3, 16, 16), out.shape

    out_np = np.asarray(out)
    # Padded rows are exactly zero (zero rows of the folded resample matrix).
    assert np.all(out_np[:, :, :3, :] == 0.0)
    assert np.all(out_np[:, :, 13:, :] == 0.0)
    assert np.abs(out_np[:, :, 3:13, :]).sum() > 0.0

    # f32 reference with padding folded the same way -- bf16-level tolerance.
    rh_ref = _padded_weights(16, 10, 16, 3)          # (H_out, H_in)
    rw_ref = _padded_weights(24, 16, 16, 0)          # (W_out, W_in)
    ref = np.einsum("oh,nchw,pw->ncop", rh_ref, np.asarray(image), rw_ref)
    np.testing.assert_allclose(out_np, ref, atol=5e-2, rtol=0)

    print("KERNEL_OK")
</pallas_src>

<mosaic_0001>
module attributes {stable_mosaic.version = 11 : i64} {
  func.func @_resize_pad_kernel(%arg0: i32, %arg1: i32, %arg2: memref<16x16xbf16, #tpu.memory_space<vmem>>, %arg3: memref<24x16xbf16, #tpu.memory_space<vmem>>, %arg4: memref<1x3x16x24xf32, #tpu.memory_space<vmem>>, %arg5: memref<1x3x16x16xf32, #tpu.memory_space<vmem>>) attributes {dimension_semantics = [#tpu.dimension_semantics<parallel>, #tpu.dimension_semantics<parallel>], iteration_bounds = array<i64: 2, 1>, scalar_prefetch = 0 : i64, scratch_operands = 0 : i64, tpu.core_type = #tpu.core_type<tc>, window_params = [{transform_indices = @transform_0, window_bounds = array<i64: 16, 16>}, {pipeline_mode = #tpu.pipeline_mode<synchronous>, transform_indices = @transform_1, window_bounds = array<i64: 24, 16>}, {transform_indices = @transform_2, window_bounds = array<i64: 1, 3, 16, 24>}, {transform_indices = @transform_3, window_bounds = array<i64: 1, 3, 16, 16>}]} {
    %c0 = arith.constant 0 : index
    %c0_0 = arith.constant 0 : index
    %0 = vector.load %arg2[%c0, %c0_0] : memref<16x16xbf16, #tpu.memory_space<vmem>>, vector<16x16xbf16>
    %c0_1 = arith.constant 0 : index
    %c0_2 = arith.constant 0 : index
    %1 = vector.load %arg3[%c0_1, %c0_2] : memref<24x16xbf16, #tpu.memory_space<vmem>>, vector<24x16xbf16>
    %c0_3 = arith.constant 0 : index
    %c0_4 = arith.constant 0 : index
    %c0_5 = arith.constant 0 : index
    %c0_6 = arith.constant 0 : index
    %2 = vector.load %arg4[%c0_3, %c0_4, %c0_5, %c0_6] : memref<1x3x16x24xf32, #tpu.memory_space<vmem>>, vector<1x3x16x24xf32>
    %3 = arith.truncf %2 : vector<1x3x16x24xf32> to vector<1x3x16x24xbf16>
    %4 = vector.shape_cast %3 : vector<1x3x16x24xbf16> to vector<3x16x24xbf16>
    %5 = vector.extract_strided_slice %4 {offsets = [0, 0, 0], sizes = [1, 16, 24], strides = [1, 1, 1]} : vector<3x16x24xbf16> to vector<1x16x24xbf16>
    %6 = vector.shape_cast %5 : vector<1x16x24xbf16> to vector<16x24xbf16>
    %cst = arith.constant dense<0.000000e+00> : vector<16x24xf32>
    %7 = tpu.matmul %0, %6, %cst {dimension_numbers = #tpu.dot_dimension_numbers<[1], [0], [0], [1], [0, 0, 1, 1], [], []>} : vector<16x16xbf16>, vector<16x24xbf16>, vector<16x24xf32> -> vector<16x24xf32>
    %8 = vector.extract_strided_slice %4 {offsets = [1, 0, 0], sizes = [1, 16, 24], strides = [1, 1, 1]} : vector<3x16x24xbf16> to vector<1x16x24xbf16>
    %9 = vector.shape_cast %8 : vector<1x16x24xbf16> to vector<16x24xbf16>
    %cst_7 = arith.constant dense<0.000000e+00> : vector<16x24xf32>
    %10 = tpu.matmul %0, %9, %cst_7 {dimension_numbers = #tpu.dot_dimension_numbers<[1], [0], [0], [1], [0, 0, 1, 1], [], []>} : vector<16x16xbf16>, vector<16x24xbf16>, vector<16x24xf32> -> vector<16x24xf32>
    %11 = vector.extract_strided_slice %4 {offsets = [2, 0, 0], sizes = [1, 16, 24], strides = [1, 1, 1]} : vector<3x16x24xbf16> to vector<1x16x24xbf16>
    %12 = vector.shape_cast %11 : vector<1x16x24xbf16> to vector<16x24xbf16>
    %cst_8 = arith.constant dense<0.000000e+00> : vector<16x24xf32>
    %13 = tpu.matmul %0, %12, %cst_8 {dimension_numbers = #tpu.dot_dimension_numbers<[1], [0], [0], [1], [0, 0, 1, 1], [], []>} : vector<16x16xbf16>, vector<16x24xbf16>, vector<16x24xf32> -> vector<16x24xf32>
    %14 = tpu.concatenate %7, %10, %13 in 0 : vector<16x24xf32>, vector<16x24xf32>, vector<16x24xf32> -> vector<48x24xf32>
    %15 = arith.truncf %14 : vector<48x24xf32> to vector<48x24xbf16>
    %cst_9 = arith.constant dense<0.000000e+00> : vector<48x16xf32>
    %16 = tpu.matmul %15, %1, %cst_9 {dimension_numbers = #tpu.dot_dimension_numbers<[1], [0], [0], [1], [0, 0, 1, 1], [], []>} : vector<48x24xbf16>, vector<24x16xbf16>, vector<48x16xf32> -> vector<48x16xf32>
    %17 = vector.shape_cast %16 : vector<48x16xf32> to vector<1x3x16x16xf32>
    %c0_10 = arith.constant 0 : index
    %c0_11 = arith.constant 0 : index
    %c0_12 = arith.constant 0 : index
    %c0_13 = arith.constant 0 : index
    %18 = vector.load %arg5[%c0_10, %c0_11, %c0_12, %c0_13] : memref<1x3x16x16xf32, #tpu.memory_space<vmem>>, vector<1x3x16x16xf32>
    tpu.vector_store %arg5[%c0_10, %c0_11, %c0_12, %c0_13], %17 {strides = array<i32>} : memref<1x3x16x16xf32, #tpu.memory_space<vmem>>, vector<1x3x16x16xf32>,
    return
  }
  func.func @transform_0(%arg0: i32, %arg1: i32) -> (i32, i32) {
    %c0_i32 = arith.constant 0 : i32
    %c0_i32_0 = arith.constant 0 : i32
    return %arg1, %c0_i32 : i32, i32
  }
  func.func @transform_1(%arg0: i32, %arg1: i32) -> (i32, i32) {
    %c0_i32 = arith.constant 0 : i32
    %c0_i32_0 = arith.constant 0 : i32
    %c0_i32_1 = arith.constant 0 : i32
    return %c0_i32, %c0_i32_0 : i32, i32
  }
  func.func @transform_2(%arg0: i32, %arg1: i32) -> (i32, i32, i32, i32) {
    %c0_i32 = arith.constant 0 : i32
    %c0_i32_0 = arith.constant 0 : i32
    %c0_i32_1 = arith.constant 0 : i32
    %c0_i32_2 = arith.constant 0 : i32
    return %arg0, %c0_i32, %c0_i32_0, %c0_i32_1 : i32, i32, i32, i32
  }
  func.func @transform_3(%arg0: i32, %arg1: i32) -> (i32, i32, i32, i32) {
    %c0_i32 = arith.constant 0 : i32
    %c0_i32_0 = arith.constant 0 : i32
    %c0_i32_1 = arith.constant 0 : i32
    return %arg0, %c0_i32, %arg1, %c0_i32_0 : i32, i32, i32, i32
  }
}

</mosaic_0001>

<llo_original>
// kernel: tpu_custom_call.1
$region0: #{tpu_custom_call.1}
  #allocation0 [shape = 'u32[]', space=smem, size = 0x4, offset = 0x4, fixed_abs, tag = 'smem constant byte address 0x4 - core index']
  #allocation1 [shape = 'u32[144,128]{1,0:T(1,128)}', space=vmem, size = 0x12000, scoped, tag = 'internal scratch']
  %s0 = inlined_call_operand.vmem [shape: bf16[16,16], index: 0, kind: input, shape index: {}]
  %s1 = inlined_call_operand.vmem [shape: bf16[24,16], index: 1, kind: input, shape index: {}]
  %s2 = inlined_call_operand.hbm [shape: f32[2,3,16,24], index: 2, kind: input, shape index: {}]
  %s3 = inlined_call_operand.hbm [shape: f32[2,3,16,16], index: 3, kind: output, shape index: {}]
  %s4 = sld [smem:[#allocation0]]
  $region49: #{tpu_custom_call.1} parent=0
    _
  %s6 = ssub.s32 1, %s4
  %s7 = scalar_select 0, %s6, %s4
  $region1: #{tpu_custom_call.1} parent=0
    #allocation2 [shape = 'u8[49152]{0}', space=vmem, size = 0xc000, scoped, tag = 'input window, operand 2']
    #allocation3 [shape = 's32[2]{0}', space=sflag, size = 0x8, scoped, tag = 'scoped memory for tpu_custom_call.1']
    #allocation4 [shape = 's32[2]{0}', space=sflag, size = 0x8, scoped, tag = 'scoped memory for tpu_custom_call.1']
    #allocation5 [shape = 'u8[49152]{0}', space=vmem, size = 0xc000, scoped, tag = 'output window, operand 0']
    %8 = vsyncpa [#allocation3], 0
    %s9 = scalar_lea.sflag [#allocation3], 1
    %10 = vsyncpa %s9, 0
    %11 = vsyncpa [#allocation4], 0
    %s12 = scalar_lea.sflag [#allocation4], 1
    %13 = vsyncpa %s12, 0
    loop: start=0, step=1, limit=4
    $region2: #{tpu_custom_call.1} parent=1 // loop_pre_header
      _
    $region3: #{tpu_custom_call.1} parent=1 // loop_header
      %s15 = sphi 0, %s19
      %p16 = scmp.ge.s32.totalorder %s15, 4
      %s22 = sphi 0, %s34
      %s23 = sphi 0, %s30
      %s24 = sphi 0, %s22
      %s25 = sphi 0, %s23
      %s26 = sphi 0, %s24
      %s27 = sphi 0, %s25
      %s37 = sphi 0, %s39
      %s40 = sphi 0, %s37
      %s41 = sphi 0, %s40
      %s57 = sphi 0, %s41
      %s61 = sphi 0, %s61
      %s63 = sphi 0, %s61
      %s64 = sphi 0, %s63
      %s78 = sphi 0, %s64
      %s84 = sphi 0, %s86
      %s87 = sphi 0, %s84
      %s88 = sphi 0, %s87
      %s104 = sphi 0, %s88
      %s112 = sphi 0, %s114
      %s115 = sphi 0, %s112
      %s116 = sphi 0, %s115
      %s132 = sphi 0, %s116
    $region4: #{tpu_custom_call.1} parent=1 // loop_header_branch
      %18 = sbr.rel (%p16) target = $region8
    $region5: #{tpu_custom_call.1} parent=1 // loop_body
      %s20 = ssub.s32 %s15, 1
      %s21 = ssub.s32 %s15, 2
      %s28 = sadd.s32 1, %s23
      %p29 = scmp.ge.s32.totalorder %s28, 1
      %s30 = scalar_select %p29, 0, %s28
      %s31 = sadd.s32 1, %s22
      %s32 = scalar_select %p29, %s31, %s22
      %p33 = scmp.ge.s32.totalorder %s32, 2
      %s34 = scalar_select %p33, 0, %s32
      %s35 = ssub.s32 %s23, %s30
      %p36 = scmp.eq.s32.totalorder %s35, 0
      %s38 = sadd.s32 %s37, 1
      %s39 = scalar_select %p36, %s37, %s38
      %p42 = pneg %p36
      %p43 = scmp.eq.s32.totalorder %s15, 1
      %p44 = por %p42, %p43
      %p45 = scmp.ne.s32.totalorder %s37, %s40
      %p46 = scmp.eq.s32.totalorder %s15, 0
      %p47 = por %p45, %p46
      %p48 = scmp.ne.s32.totalorder %s37, %s40
      %p49 = scmp.eq.s32.totalorder %s20, 1
      %p50 = por %p48, %p49
      %p51 = scmp.ne.s32.totalorder %s40, %s41
      %p52 = scmp.eq.s32.totalorder %s20, 0
      %p53 = por %p51, %p52
      %p54 = scmp.ne.s32.totalorder %s40, %s41
      %p55 = scmp.eq.s32.totalorder %s21, 1
      %p56 = por %p54, %p55
      %p58 = scmp.ne.s32.totalorder %s41, %s57
      %p59 = scmp.eq.s32.totalorder %s21, 0
      %p60 = por %p58, %p59
      %s62 = sadd.s32 %s61, 1
      %p65 = scmp.eq.s32.totalorder %s15, 1
      %p66 = scmp.ne.s32.totalorder %s61, %s63
      %p67 = scmp.eq.s32.totalorder %s15, 0
      %p68 = por %p66, %p67
      %p69 = scmp.ne.s32.totalorder %s61, %s63
      %p70 = scmp.eq.s32.totalorder %s20, 1
      %p71 = por %p69, %p70
      %p72 = scmp.ne.s32.totalorder %s63, %s64
      %p73 = scmp.eq.s32.totalorder %s20, 0
      %p74 = por %p72, %p73
      %p75 = scmp.ne.s32.totalorder %s63, %s64
      %p76 = scmp.eq.s32.totalorder %s21, 1
      %p77 = por %p75, %p76
      %p79 = scmp.ne.s32.totalorder %s64, %s78
      %p80 = scmp.eq.s32.totalorder %s21, 0
      %p81 = por %p79, %p80
      %s82 = ssub.s32 %s22, %s34
      %p83 = scmp.eq.s32.totalorder %s82, 0
      %s85 = sadd.s32 %s84, 1
      %s86 = scalar_select %p83, %s84, %s85
      %p89 = pneg %p83
      %p90 = scmp.eq.s32.totalorder %s15, 1
      %p91 = por %p89, %p90
      %p92 = scmp.ne.s32.totalorder %s84, %s87
      %p93 = scmp.eq.s32.totalorder %s15, 0
      %p94 = por %p92, %p93
      %p95 = scmp.ne.s32.totalorder %s84, %s87
      %p96 = scmp.eq.s32.totalorder %s20, 1
      %p97 = por %p95, %p96
      %p98 = scmp.ne.s32.totalorder %s87, %s88
      %p99 = scmp.eq.s32.totalorder %s20, 0
      %p100 = por %p98, %p99
      %p101 = scmp.ne.s32.totalorder %s87, %s88
      %p102 = scmp.eq.s32.totalorder %s21, 1
      %p103 = por %p101, %p102
      %p105 = scmp.ne.s32.totalorder %s88, %s104
      %p106 = scmp.eq.s32.totalorder %s21, 0
      %p107 = por %p105, %p106
      %s108 = ssub.s32 %s22, %s34
      %s109 = ssub.s32 %s23, %s30
      %s110 = sor.u32 %s108, %s109
      %p111 = scmp.eq.s32.totalorder %s110, 0
      %s113 = sadd.s32 %s112, 1
      %s114 = scalar_select %p111, %s112, %s113
      %p117 = pneg %p111
      %p118 = scmp.eq.s32.totalorder %s15, 1
      %p119 = por %p117, %p118
      %p120 = scmp.ne.s32.totalorder %s112, %s115
      %p121 = scmp.eq.s32.totalorder %s15, 0
      %p122 = por %p120, %p121
      %p123 = scmp.ne.s32.totalorder %s112, %s115
      %p124 = scmp.eq.s32.totalorder %s20, 1
      %p125 = por %p123, %p124
      %p126 = scmp.ne.s32.totalorder %s115, %s116
      %p127 = scmp.eq.s32.totalorder %s20, 0
      %p128 = por %p126, %p127
      %p129 = scmp.ne.s32.totalorder %s115, %s116
      %p130 = scmp.eq.s32.totalorder %s21, 1
      %p131 = por %p129, %p130
      %p133 = scmp.ne.s32.totalorder %s116, %s132
      %p134 = scmp.eq.s32.totalorder %s21, 0
      %p135 = por %p133, %p134
      %p136 = scmp.le.s32.totalorder 1, %s15
      %p137 = scmp.lt.s32.totalorder %s15, 3
      %p138 = pnand %p136, %p137
      %p139 = pneg %p138
      // Predicated region
      $region9: #{tpu_custom_call.1} parent=5 // pred_check
        _
      $region10: #{tpu_custom_call.1} parent=5 // pred_check_branch
        %141 = sbr.rel (%p138) target = $region12
      $region11: #{tpu_custom_call.1} parent=5 // pred_region
        %s142 = ssub.s32 %s15, 1
        // Predicated region
        $region13: #{tpu_custom_call.1} parent=11 // pred_check
          %p143 = pneg %p53
        $region14: #{tpu_custom_call.1} parent=11 // pred_check_branch
          %145 = sbr.rel (%p143) target = $region16
        $region15: #{tpu_custom_call.1} parent=11 // pred_region
          %s146 = smul.u32 2, %s25
          %p147 = scmp.lt.s32.totalorder %s146, 1
          %s148 = scalar_select %p147, %s146, 1
          %s149 = smul.addr %s148, 4
          %s150 = scalar_lea.vmem %s0, %s149
          %s151 = smul.u32 2, %s25
        $region16: #{tpu_custom_call.1} parent=11 // pred_fallthru
          _
        // Predicated region
        $region17: #{tpu_custom_call.1} parent=11 // pred_check
          %p152 = pneg %p74
        $region18: #{tpu_custom_call.1} parent=11 // pred_check_branch
          %154 = sbr.rel (%p152) target = $region20
        $region19: #{tpu_custom_call.1} parent=11 // pred_region
          _
        $region20: #{tpu_custom_call.1} parent=11 // pred_fallthru
          _
      $region12: #{tpu_custom_call.1} parent=5 // pred_fallthru
        _
      %p155 = scmp.lt.s32.totalorder %s15, 2
      // Predicated region
      $region21: #{tpu_custom_call.1} parent=5 // pred_check
        %p156 = pneg %p155
      $region22: #{tpu_custom_call.1} parent=5 // pred_check_branch
        %158 = sbr.rel (%p156) target = $region24
      $region23: #{tpu_custom_call.1} parent=5 // pred_region
        // Predicated region
        $region25: #{tpu_custom_call.1} parent=23 // pred_check
          %p159 = pneg %p94
        $region26: #{tpu_custom_call.1} parent=23 // pred_check_branch
          %161 = sbr.rel (%p159) target = $region28
        $region27: #{tpu_custom_call.1} parent=23 // pred_region
          %s162 = sand.u32 %s84, 1
          %s163 = scalar_lea.sflag [#allocation3], %s162
          %s164 = sand.u32 %s84, 1
          %s165 = smul.addr %s164, 48
          %s166 = scalar_lea.vmem [#allocation2], %s165
          %s168 = ssub.s32 768, 768
          %169 = vsyncadd %s163, %s168
          %s170 = smul.addr %s22, 6
          %s171 = smul.addr %s170, 128
          %s172 = scalar_lea.hbm %s2, %s171
          %s173 = sshll.u32 %s166, 4
          %s174 = int_to_ptr.vmem [resolvable:$true] %s173
          %179 = dma.hbm_to_vmem [thread:$0]  %s172, 768, %s174, %s163, 128, 128, 8
        $region28: #{tpu_custom_call.1} parent=23 // pred_fallthru
          _
      $region24: #{tpu_custom_call.1} parent=5 // pred_fallthru
        _
      %p180 = scmp.le.s32.totalorder 1, %s15
      %p181 = scmp.lt.s32.totalorder %s15, 3
      %p182 = pnand %p180, %p181
      %p183 = pneg %p182
      // Predicated region
      $region29: #{tpu_custom_call.1} parent=5 // pred_check
        _
      $region30: #{tpu_custom_call.1} parent=5 // pred_check_branch
        %185 = sbr.rel (%p182) target = $region32
      $region31: #{tpu_custom_call.1} parent=5 // pred_region
        %s186 = ssub.s32 %s15, 1
        %s187 = sand.u32 %s87, 1
        %s188 = scalar_lea.sflag [#allocation3], %s187
        %s189 = sand.u32 %s87, 1
        %s190 = smul.addr %s189, 48
        %s191 = scalar_lea.vmem [#allocation2], %s190
        // Predicated region
        $region33: #{tpu_custom_call.1} parent=31 // pred_check
          %p192 = pneg %p100
        $region34: #{tpu_custom_call.1} parent=31 // pred_check_branch
          %194 = sbr.rel (%p192) target = $region36
        $region35: #{tpu_custom_call.1} parent=31 // pred_region
          %195 = dma.done %s188, 768
        $region36: #{tpu_custom_call.1} parent=31 // pred_fallthru
          _
        %s196 = smul.u32 2, %s25
        %p197 = scmp.lt.s32.totalorder %s196, 1
        %s198 = scalar_select %p197, %s196, 1
        %s199 = smul.addr %s198, 4
        %s200 = scalar_lea.vmem %s0, %s199
        %p201 = pneg %p53
        %p202 = pneg %p50
        %p203 = pneg %p74
        %p204 = pneg %p71
        %s205 = sand.u32 %s87, 1
        %s206 = scalar_lea.sflag [#allocation3], %s205
        %s207 = sand.u32 %s87, 1
        %s208 = smul.addr %s207, 48
        %s209 = scalar_lea.vmem [#allocation2], %s208
        %p210 = pneg %p100
        %p211 = pneg %p97
        %p212 = pneg %p128
        %p213 = pneg %p125
        %s214 = sand.u32 %s115, 1
        %s215 = scalar_lea.sflag [#allocation4], %s214
        %s216 = sand.u32 %s115, 1
        %s217 = smul.addr %s216, 48
        %s218 = scalar_lea.vmem [#allocation5], %s217
        %s219 = smul.u32 2, %s25
        %p220 = scmp.lt.s32.totalorder %s219, 1
        %s221 = scalar_select %p220, %s219, 1
        %s222 = smul.addr %s221, 4
        %s223 = scalar_lea.vmem %s0, %s222
        %s224 = smul.u32 2, %s25
        %s225 = smul.u32 2, %s25
        %v227 = vld [vmem:[%s223] sm:$0xf]
        %v228 = vld [vmem:[%s223 + $0x4] sm:$0xf]
        %v229 = vld [vmem:[%s1] sm:$0xf]
        %v230 = vld [vmem:[%s1 + $0x4] sm:$0xf]
        %v231 = vld [vmem:[%s1 + $0x8] sm:$0xf]
        %v232 = vld [vmem:[%s191] sm:$0xff]
        %v233 = vld [vmem:[%s191 + $0x8] sm:$0xff]
        %v234 = vld [vmem:[%s191 + $0x10] sm:$0xff]
        %v235 = vld [vmem:[%s191 + $0x18] sm:$0xff]
        %v236 = vld [vmem:[%s191 + $0x20] sm:$0xff]
        %v237 = vld [vmem:[%s191 + $0x28] sm:$0xff]
        %v238 = vpack.c.bf16 %v233, %v232
        %v239 = vpack.c.bf16 %v235, %v234
        %v240 = vpack.c.bf16 %v237, %v236
        %v243 = vunpack.c.l.b16 %v227
        %v244 = vunpack.c.l.b16 %v228
        %v245 = vpack.c.b16 %v244, %v243
        %vm246 = vcmask 130048
        %v248 = vsel %vm246, %v245, 0
        %250 = vmatprep.subr.bf16.mxu0 0
        %251 = vmatpush1.bf16.msra.mxu0 %v238
        %252 = vmatprep.subr.bf16.mxu0 0
        %253 = vmatpush1.bf16.msra.mxu0 0
        %254 = vmatprep.subr.bf16.mxu0 0
        %255 = vmatpush1.bf16.msra.mxu0 0
        %256 = vmatprep.subr.bf16.mxu0 0
        %257 = vmatpush1.bf16.msra.mxu0 0
        %258 = vmatprep.subr.bf16.mxu0 0
        %259 = vmatpush1.bf16.msra.mxu0 0
        %260 = vmatprep.subr.bf16.mxu0 0
        %261 = vmatpush1.bf16.msra.mxu0 0
        %262 = vmatprep.subr.bf16.mxu0 0
        %263 = vmatpush1.bf16.msra.mxu0 0
        %264 = vmatprep.subr.bf16.mxu0 0
        %265 = vmatpush1.bf16.msra.mxu0 0
        %266 = vmatprep.subr.bf16.mxu0 0
        %267 = vmatpush1.bf16.msra.mxu0 0
        %268 = vmatprep.subr.bf16.mxu0 0
        %269 = vmatpush1.bf16.msra.mxu0 0
        %270 = vmatprep.subr.bf16.mxu0 0
        %271 = vmatpush1.bf16.msra.mxu0 0
        %272 = vmatprep.subr.bf16.mxu0 0
        %273 = vmatpush1.bf16.msra.mxu0 0
        %274 = vmatprep.subr.bf16.mxu0 0
        %275 = vmatpush1.bf16.msra.mxu0 0
        %276 = vmatprep.subr.bf16.mxu0 0
        %277 = vmatpush1.bf16.msra.mxu0 0
        %278 = vmatprep.subr.bf16.mxu0 0
        %279 = vmatpush1.bf16.msra.mxu0 0
        %280 = vmatprep.subr.bf16.mxu0 0
        %281 = vmatpush1.bf16.msra.mxu0 0
        %282 = vmatprep.mubr.bf16.mxu0 0
        %283 = vmatmul.mubr.bf16.gmra.mrb[0].mxu0 %v248
        %v284 = vpop.f32.mrb[0].mxu0
        %v285 = vadd.f32 0.0, %v284
        %v286 = vpop.f32.mrb[0].mxu0
        %v287 = vpop.f32.mrb[0].mxu0
        %v288 = vadd.f32 0.0, %v287
        %v289 = vpop.f32.mrb[0].mxu0
        %290 = vdwg.mxu0
        %291 = vmatprep.subr.bf16.mxu0 0
        %292 = vmatpush1.bf16.msra.mxu0 %v239
        %293 = vmatprep.subr.bf16.mxu0 0
        %294 = vmatpush1.bf16.msra.mxu0 0
        %295 = vmatprep.subr.bf16.mxu0 0
        %296 = vmatpush1.bf16.msra.mxu0 0
        %297 = vmatprep.subr.bf16.mxu0 0
        %298 = vmatpush1.bf16.msra.mxu0 0
        %299 = vmatprep.subr.bf16.mxu0 0
        %300 = vmatpush1.bf16.msra.mxu0 0
        %301 = vmatprep.subr.bf16.mxu0 0
        %302 = vmatpush1.bf16.msra.mxu0 0
        %303 = vmatprep.subr.bf16.mxu0 0
        %304 = vmatpush1.bf16.msra.mxu0 0
        %305 = vmatprep.subr.bf16.mxu0 0
        %306 = vmatpush1.bf16.msra.mxu0 0
        %307 = vmatprep.subr.bf16.mxu0 0
        %308 = vmatpush1.bf16.msra.mxu0 0
        %309 = vmatprep.subr.bf16.mxu0 0
        %310 = vmatpush1.bf16.msra.mxu0 0
        %311 = vmatprep.subr.bf16.mxu0 0
        %312 = vmatpush1.bf16.msra.mxu0 0
        %313 = vmatprep.subr.bf16.mxu0 0
        %314 = vmatpush1.bf16.msra.mxu0 0
        %315 = vmatprep.subr.bf16.mxu0 0
        %316 = vmatpush1.bf16.msra.mxu0 0
        %317 = vmatprep.subr.bf16.mxu0 0
        %318 = vmatpush1.bf16.msra.mxu0 0
        %319 = vmatprep.subr.bf16.mxu0 0
        %320 = vmatpush1.bf16.msra.mxu0 0
        %321 = vmatprep.subr.bf16.mxu0 0
        %322 = vmatpush1.bf16.msra.mxu0 0
        %323 = vmatprep.mubr.bf16.mxu0 0
        %324 = vmatmul.mubr.bf16.gmra.mrb[0].mxu0 %v248
        %v325 = vpop.f32.mrb[0].mxu0
        %v326 = vadd.f32 0.0, %v325
        %v327 = vpop.f32.mrb[0].mxu0
        %v328 = vpop.f32.mrb[0].mxu0
        %v329 = vadd.f32 0.0, %v328
        %v330 = vpop.f32.mrb[0].mxu0
        %331 = vdwg.mxu0
        %332 = vmatprep.subr.bf16.mxu0 0
        %333 = vmatpush1.bf16.msra.mxu0 %v240
        %334 = vmatprep.subr.bf16.mxu0 0
        %335 = vmatpush1.bf16.msra.mxu0 0
        %336 = vmatprep.subr.bf16.mxu0 0
        %337 = vmatpush1.bf16.msra.mxu0 0
        %338 = vmatprep.subr.bf16.mxu0 0
        %339 = vmatpush1.bf16.msra.mxu0 0
        %340 = vmatprep.subr.bf16.mxu0 0
        %341 = vmatpush1.bf16.msra.mxu0 0
        %342 = vmatprep.subr.bf16.mxu0 0
        %343 = vmatpush1.bf16.msra.mxu0 0
        %344 = vmatprep.subr.bf16.mxu0 0
        %345 = vmatpush1.bf16.msra.mxu0 0
        %346 = vmatprep.subr.bf16.mxu0 0
        %347 = vmatpush1.bf16.msra.mxu0 0
        %348 = vmatprep.subr.bf16.mxu0 0
        %349 = vmatpush1.bf16.msra.mxu0 0
        %350 = vmatprep.subr.bf16.mxu0 0
        %351 = vmatpush1.bf16.msra.mxu0 0
        %352 = vmatprep.subr.bf16.mxu0 0
        %353 = vmatpush1.bf16.msra.mxu0 0
        %354 = vmatprep.subr.bf16.mxu0 0
        %355 = vmatpush1.bf16.msra.mxu0 0
        %356 = vmatprep.subr.bf16.mxu0 0
        %357 = vmatpush1.bf16.msra.mxu0 0
        %358 = vmatprep.subr.bf16.mxu0 0
        %359 = vmatpush1.bf16.msra.mxu0 0
        %360 = vmatprep.subr.bf16.mxu0 0
        %361 = vmatpush1.bf16.msra.mxu0 0
        %362 = vmatprep.subr.bf16.mxu0 0
        %363 = vmatpush1.bf16.msra.mxu0 0
        %364 = vmatprep.mubr.bf16.mxu0 0
        %365 = vmatmul.mubr.bf16.gmra.mrb[0].mxu0 %v248
        %v366 = vpop.f32.mrb[0].mxu0
        %v367 = vadd.f32 0.0, %v366
        %v368 = vpop.f32.mrb[0].mxu0
        %v369 = vpop.f32.mrb[0].mxu0
        %v370 = vadd.f32 0.0, %v369
        %v371 = vpop.f32.mrb[0].mxu0
        %372 = vdwg.mxu0
        %v373 = vpack.c.bf16 %v288, %v285
        %v374 = vpack.c.bf16 %v329, %v326
        %v375 = vpack.c.bf16 %v370, %v367
        %v379 = vunpack.c.l.b16 %v229
        %v380 = vunpack.c.l.b16 %v230
        %v381 = vunpack.c.l.b16 %v231
        %v382 = vpack.c.b16 %v380, %v379
        %v383 = vpack.c.b16 %v381, %v381
        %vm385 = vcmask 195584
        %v387 = vsel %vm385, %v373, 0
        %v390 = vsel %vm385, %v374, 0
        %v393 = vsel %vm385, %v375, 0
        %vm395 = vcmask 1043456
        %v397 = vsel %vm395, %v383, 0
        %399 = vmatprep.subr.bf16.mxu0 0
        %400 = vmatpush1.bf16.msra.mxu0 %v382
        %401 = vmatprep.subr.bf16.mxu0 0
        %402 = vmatpush1.bf16.msra.mxu0 %v397
        %403 = vmatprep.subr.bf16.mxu0 0
        %404 = vmatpush1.bf16.msra.mxu0 0
        %405 = vmatprep.subr.bf16.mxu0 0
        %406 = vmatpush1.bf16.msra.mxu0 0
        %407 = vmatprep.subr.bf16.mxu0 0
        %408 = vmatpush1.bf16.msra.mxu0 0
        %409 = vmatprep.subr.bf16.mxu0 0
        %410 = vmatpush1.bf16.msra.mxu0 0
        %411 = vmatprep.subr.bf16.mxu0 0
        %412 = vmatpush1.bf16.msra.mxu0 0
        %413 = vmatprep.subr.bf16.mxu0 0
        %414 = vmatpush1.bf16.msra.mxu0 0
        %415 = vmatprep.subr.bf16.mxu0 0
        %416 = vmatpush1.bf16.msra.mxu0 0
        %417 = vmatprep.subr.bf16.mxu0 0
        %418 = vmatpush1.bf16.msra.mxu0 0
        %419 = vmatprep.subr.bf16.mxu0 0
        %420 = vmatpush1.bf16.msra.mxu0 0
        %421 = vmatprep.subr.bf16.mxu0 0
        %422 = vmatpush1.bf16.msra.mxu0 0
        %423 = vmatprep.subr.bf16.mxu0 0
        %424 = vmatpush1.bf16.msra.mxu0 0
        %425 = vmatprep.subr.bf16.mxu0 0
        %426 = vmatpush1.bf16.msra.mxu0 0
        %427 = vmatprep.subr.bf16.mxu0 0
        %428 = vmatpush1.bf16.msra.mxu0 0
        %429 = vmatprep.subr.bf16.mxu0 0
        %430 = vmatpush1.bf16.msra.mxu0 0
        %431 = vmatprep.mubr.bf16.mxu0 0
        %432 = vmatmul.mubr.bf16.gmra.mrb[0].mxu0 %v387
        %v433 = vpop.f32.mrb[0].mxu0
        %v434 = vadd.f32 0.0, %v433
        %v435 = vpop.f32.mrb[0].mxu0
        %v436 = vpop.f32.mrb[0].mxu0
        %v437 = vadd.f32 0.0, %v436
        %v438 = vpop.f32.mrb[0].mxu0
        %439 = vmatprep.mubr.bf16.mxu0 0
        %440 = vmatmul.mubr.bf16.gmra.mrb[0].mxu0 %v390
        %v441 = vpop.f32.mrb[0].mxu0
        %v442 = vadd.f32 0.0, %v441
        %v443 = vpop.f32.mrb[0].mxu0
        %v444 = vpop.f32.mrb[0].mxu0
        %v445 = vadd.f32 0.0, %v444
        %v446 = vpop.f32.mrb[0].mxu0
        %447 = vmatprep.mubr.bf16.mxu0 0
        %448 = vmatmul.mubr.bf16.gmra.mrb[0].mxu0 %v393
        %v449 = vpop.f32.mrb[0].mxu0
        %v450 = vadd.f32 0.0, %v449
        %v451 = vpop.f32.mrb[0].mxu0
        %v452 = vpop.f32.mrb[0].mxu0
        %v453 = vadd.f32 0.0, %v452
        %v454 = vpop.f32.mrb[0].mxu0
        %455 = vdwg.mxu0
        %456 = vst.msk [vmem:[%s218] sm:$0xff] %vm246, %v434
        %457 = vst.msk [vmem:[%s218 + $0x8] sm:$0xff] %vm246, %v437
        %458 = vst.msk [vmem:[%s218 + $0x10] sm:$0xff] %vm246, %v442
        %459 = vst.msk [vmem:[%s218 + $0x18] sm:$0xff] %vm246, %v445
        %460 = vst.msk [vmem:[%s218 + $0x20] sm:$0xff] %vm246, %v450
        %461 = vst.msk [vmem:[%s218 + $0x28] sm:$0xff] %vm246, %v453
        %s462 = sand.u32 %s115, 1
        %s463 = scalar_lea.sflag [#allocation4], %s462
        %s464 = sand.u32 %s115, 1
        %s465 = smul.addr %s464, 48
        %s466 = scalar_lea.vmem [#allocation5], %s465
        // Predicated region
        $region37: #{tpu_custom_call.1} parent=31 // pred_check
          %p467 = pneg %p125
        $region38: #{tpu_custom_call.1} parent=31 // pred_check_branch
          %469 = sbr.rel (%p467) target = $region40
        $region39: #{tpu_custom_call.1} parent=31 // pred_region
          %s470 = smul.u32 2, %s25
          %s472 = ssub.s32 768, 768
          %473 = vsyncadd %s463, %s472
          %s474 = smul.addr %s24, 6
          %s475 = sadd.s32 %s470, %s474
          %s476 = smul.addr %s475, 128
          %s477 = scalar_lea.hbm %s3, %s476
          %s478 = sshll.u32 %s466, 4
          %s479 = int_to_ptr.vmem [resolvable:$true] %s478
          %484 = dma.vmem_to_hbm [thread:$0]  %s479, 768, %s477, %s463, 128, 128, 8
        $region40: #{tpu_custom_call.1} parent=31 // pred_fallthru
          _
      $region32: #{tpu_custom_call.1} parent=5 // pred_fallthru
        _
      %p485 = scmp.le.s32.totalorder 2, %s15
      // Predicated region
      $region41: #{tpu_custom_call.1} parent=5 // pred_check
        %p486 = pneg %p485
      $region42: #{tpu_custom_call.1} parent=5 // pred_check_branch
        %488 = sbr.rel (%p486) target = $region44
      $region43: #{tpu_custom_call.1} parent=5 // pred_region
        %s489 = ssub.s32 %s15, 2
        // Predicated region
        $region45: #{tpu_custom_call.1} parent=43 // pred_check
          %p490 = pneg %p131
        $region46: #{tpu_custom_call.1} parent=43 // pred_check_branch
          %492 = sbr.rel (%p490) target = $region48
        $region47: #{tpu_custom_call.1} parent=43 // pred_region
          %s493 = sand.u32 %s116, 1
          %s494 = scalar_lea.sflag [#allocation4], %s493
          %s495 = sand.u32 %s116, 1
          %s496 = smul.addr %s495, 48
          %s497 = scalar_lea.vmem [#allocation5], %s496
          %498 = dma.done %s494, 768
        $region48: #{tpu_custom_call.1} parent=43 // pred_fallthru
          _
      $region44: #{tpu_custom_call.1} parent=5 // pred_fallthru
        _
    $region6: #{tpu_custom_call.1} parent=1 // loop_footer
      %s19 = sadd.s32 1, %s15
    $region7: #{tpu_custom_call.1} parent=1 // loop_footer_branch
      %14 = sbr.rel target = $region3
    $region8: #{tpu_custom_call.1} parent=1 // loop_exit
      _
    %499 = vsyncpa [#allocation3], 1
    %s500 = scalar_lea.sflag [#allocation3], 1
    %501 = vsyncpa %s500, 1
    %502 = vsyncpa [#allocation4], 1
    %s503 = scalar_lea.sflag [#allocation4], 1
    %504 = vsyncpa %s503, 1

</llo_original>
